<compile_context>
chip_gen: v5e
topology: v5e:2x2
jax: 0.10.0
libtpu: 0.0.40
codegen_flags: <defaults>
</compile_context>

<pallas_src>
import jax
import jax.numpy as jnp
from jax.experimental import pallas as pl
from jax.experimental.pallas import tpu as pltpu


def _round_up(x, m):
    return (x + m - 1) // m * m


def rnn_kernel(x_ref, wx_ref, wh_ref, b_ref, hseq_ref, xproj_ref, h_state):
    """One grid step == one chunk of T_CHUNK time steps.

    x_ref:     (1, T_CHUNK*B_pad, I_pad)  bf16  flattened chunk of inputs
    wx_ref:    (I_pad, H_pad)             bf16  resident
    wh_ref:    (H_pad, H_pad)             bf16  resident
    b_ref:     (1, H_pad)                 f32   resident (all biases folded)
    hseq_ref:  (T_CHUNK, B_pad, H_pad)    out_dtype  output chunk
    xproj_ref: (T_CHUNK*B_pad, H_pad)     f32   scratch: hoisted x-projection
    h_state:   (B_pad, H_pad)             f32   hidden state carried across grid steps
    """
    @pl.when(pl.program_id(0) == 0)
    def _():
        h_state[...] = jnp.zeros_like(h_state)

    t_chunk = hseq_ref.shape[0]
    b_pad = h_state.shape[0]

    # Hoisted input projection for the whole chunk: one big MXU matmul
    # (M = T_CHUNK * B_pad rows), bias folded in once. Staged in VMEM scratch
    # so the unrolled recurrence does not keep the whole chunk live in vregs.
    xproj_ref[...] = jnp.dot(x_ref[0], wx_ref[...],
                             preferred_element_type=jnp.float32) + b_ref[...]

    # Sequential recurrence over the chunk; t_chunk is small and static, so a
    # plain Python loop == full unroll with static slice offsets. The hidden
    # state lives in vregs for the whole chunk (single VMEM read/write).
    h = h_state[...]
    for t in range(t_chunk):
        hh = jnp.dot(h.astype(wh_ref.dtype), wh_ref[...],
                     preferred_element_type=jnp.float32)        # one MXU push/step
        h = jnp.tanh(xproj_ref[pl.ds(t * b_pad, b_pad), :] + hh)  # tanh -> EUP
        hseq_ref[t] = h.astype(hseq_ref.dtype)                  # lane-dense full-tile store
    h_state[...] = h


def rnn_forward(x, wx, bx_lin, wh, bh_lin, bh, bx, *, t_chunk=None,
                out_dtype=jnp.float32):
    """
    x:      (S, B, I) f32
    wx:     (H, I)  linear_x.weight     bx_lin: (H,) linear_x.bias
    wh:     (H, H)  linear_h.weight     bh_lin: (H,) linear_h.bias
    bh, bx: (1, H)  module's extra bias terms (zeros in the module)
    returns: h_seq (S, B, H) out_dtype, h (B, H) out_dtype
    """
    S, B, I = x.shape
    H = wx.shape[0]

    B_pad = max(8, _round_up(B, 8))       # sublane-aligned batch
    H_pad = _round_up(H, 128)             # lane-dense hidden dim
    # Lane-dense input dim only when I is already large; padding tiny I would
    # multiply the x HBM bytes (4 -> 128 is 32x) for no MXU benefit.
    I_pad = _round_up(I, 128) if I > 128 else I

    out_bytes = jnp.dtype(out_dtype).itemsize

    # --- generation-aware VMEM budget & chunk selection ---
    try:
        vmem_bytes = int(pltpu.get_tpu_info().vmem_capacity_bytes)
    except Exception:
        vmem_bytes = 64 * 1024 * 1024     # conservative fallback (v7x per-TC VMEM)
    vmem_limit = max(32 * 1024 * 1024, int(vmem_bytes * 0.75))
    budget = int(vmem_limit * 0.8)        # headroom for compiler-internal scratch

    # Per-unit-of-t_chunk VMEM cost (double-buffered x and h_seq, xproj scratch)
    per_step = (2 * B_pad * H_pad * out_bytes
                + 2 * B_pad * I_pad * 2
                + B_pad * H_pad * 4)
    # Fixed cost: resident weights/bias (double-buffered by default) + h_state.
    fixed = (2 * (I_pad * H_pad * 2 + H_pad * H_pad * 2 + H_pad * 4)
             + B_pad * H_pad * 4)

    if t_chunk is None:
        t_chunk = max(1, (budget - fixed) // per_step)
        t_chunk = int(min(t_chunk, S, 32))   # cap unroll length / code size
    t_chunk = max(1, min(int(t_chunk), S))

    # Pad S up to a multiple of t_chunk instead of demanding divisibility.
    S_pad = _round_up(S, t_chunk)
    n_chunks = S_pad // t_chunk

    # --- pad / cast / fold parameters (wrapper-side, one-time cost) ---
    x_pad = jnp.zeros((S_pad, B_pad, I_pad), jnp.float32).at[:S, :B, :I].set(x)
    # Flatten (time, batch) so the kernel's x-projection is a single 2D matmul.
    x_bf = x_pad.astype(jnp.bfloat16).reshape(n_chunks, t_chunk * B_pad, I_pad)

    wx_t = (jnp.zeros((I_pad, H_pad), jnp.float32)
            .at[:I, :H].set(wx.T).astype(jnp.bfloat16))
    wh_t = (jnp.zeros((H_pad, H_pad), jnp.float32)
            .at[:H, :H].set(wh.T).astype(jnp.bfloat16))
    bias = (jnp.zeros((1, H_pad), jnp.float32)
            .at[:, :H].set((bx_lin + bh_lin)[None, :] + bh + bx))

    grid_spec = pltpu.PrefetchScalarGridSpec(
        num_scalar_prefetch=0,
        grid=(n_chunks,),
        in_specs=[
            pl.BlockSpec((1, t_chunk * B_pad, I_pad), lambda g: (g, 0, 0)),  # x chunk
            pl.BlockSpec((I_pad, H_pad), lambda g: (0, 0)),                  # Wx^T resident
            pl.BlockSpec((H_pad, H_pad), lambda g: (0, 0)),                  # Wh^T resident
            pl.BlockSpec((1, H_pad), lambda g: (0, 0)),                      # folded bias
        ],
        out_specs=pl.BlockSpec((t_chunk, B_pad, H_pad), lambda g: (g, 0, 0)),
        scratch_shapes=[
            pltpu.VMEM((t_chunk * B_pad, H_pad), jnp.float32),   # staged x-projection
            pltpu.VMEM((B_pad, H_pad), jnp.float32),             # f32 hidden state
        ],
    )

    h_seq_pad = pl.pallas_call(
        rnn_kernel,
        grid_spec=grid_spec,
        out_shape=jax.ShapeDtypeStruct((S_pad, B_pad, H_pad), out_dtype),
        compiler_params=pltpu.CompilerParams(
            dimension_semantics=("arbitrary",),   # sequential recurrence over time
            vmem_limit_bytes=vmem_limit,
        ),
    )(x_bf, wx_t, wh_t, bias)

    h_seq = h_seq_pad[:S, :B, :H]
    return h_seq, h_seq[-1]


def rnn_reference(x, wx, bx_lin, wh, bh_lin, bh, bx):
    """Pure-JAX reference mirroring the PyTorch loop (and the kernel's bf16
    quantization of the matmul inputs, with f32 accumulation/state)."""
    S, B, _ = x.shape
    H = wx.shape[0]
    q = lambda a: a.astype(jnp.bfloat16).astype(jnp.float32)

    xq = q(x)
    wx_tq = q(wx.T)
    wh_tq = q(wh.T)
    bias = (bx_lin + bh_lin)[None, :] + bh + bx

    def step(h, x_t):
        pre = x_t @ wx_tq + q(h) @ wh_tq + bias
        h_new = jnp.tanh(pre)
        return h_new, h_new

    h0 = jnp.zeros((B, H), jnp.float32)
    h_last, h_seq = jax.lax.scan(step, h0, xq)
    return h_seq, h_last


if __name__ == "__main__":
    # Small shapes consistent with the module's forward.
    SEQ, BATCH, INPUT, HIDDEN = 8, 2, 4, 32

    key = jax.random.PRNGKey(0)
    k_x, k_wx, k_bx, k_wh, k_bh = jax.random.split(key, 5)

    x = jax.random.normal(k_x, (SEQ, BATCH, INPUT), jnp.float32)

    # Deterministic "PyTorch-style" init: uniform(-1/sqrt(fan_in), 1/sqrt(fan_in)).
    bound_x = 1.0 / (INPUT ** 0.5)
    bound_h = 1.0 / (HIDDEN ** 0.5)
    wx = jax.random.uniform(k_wx, (HIDDEN, INPUT), jnp.float32, -bound_x, bound_x)   # linear_x.weight
    bx_lin = jax.random.uniform(k_bx, (HIDDEN,), jnp.float32, -bound_x, bound_x)     # linear_x.bias
    wh = jax.random.uniform(k_wh, (HIDDEN, HIDDEN), jnp.float32, -bound_h, bound_h)  # linear_h.weight
    bh_lin = jax.random.uniform(k_bh, (HIDDEN,), jnp.float32, -bound_h, bound_h)     # linear_h.bias
    bh = jnp.zeros((1, HIDDEN), jnp.float32)   # module's self.bh
    bx = jnp.zeros((1, HIDDEN), jnp.float32)   # module's self.bx

    ref_seq, ref_last = rnn_reference(x, wx, bx_lin, wh, bh_lin, bh, bx)

    # t_chunk=3 with SEQ=8 exercises both the hidden-state carry across grid
    # steps and the new S-padding path (8 -> 9, non-divisible chunk).
    h_seq, h_last = rnn_forward(x, wx, bx_lin, wh, bh_lin, bh, bx, t_chunk=3)
    jax.block_until_ready((h_seq, h_last))
    assert h_seq.shape == (SEQ, BATCH, HIDDEN)
    assert h_last.shape == (BATCH, HIDDEN)
    assert jnp.allclose(h_seq, ref_seq, atol=1e-4, rtol=1e-4)
    assert jnp.allclose(h_last, ref_last, atol=1e-4, rtol=1e-4)

    # Auto chunk selection (VMEM-budget driven; collapses to a single chunk here).
    h_seq2, h_last2 = rnn_forward(x, wx, bx_lin, wh, bh_lin, bh, bx)
    jax.block_until_ready((h_seq2, h_last2))
    assert jnp.allclose(h_seq2, ref_seq, atol=1e-4, rtol=1e-4)
    assert jnp.allclose(h_last2, ref_last, atol=1e-4, rtol=1e-4)

    print("KERNEL_OK")
</pallas_src>

<mosaic_0001>
module attributes {stable_mosaic.version = 11 : i64} {
  func.func @rnn_kernel(%arg0: i32, %arg1: memref<1x24x4xbf16, #tpu.memory_space<vmem>>, %arg2: memref<4x128xbf16, #tpu.memory_space<vmem>>, %arg3: memref<128x128xbf16, #tpu.memory_space<vmem>>, %arg4: memref<1x128xf32, #tpu.memory_space<vmem>>, %arg5: memref<3x8x128xf32, #tpu.memory_space<vmem>>, %arg6: memref<24x128xf32, #tpu.memory_space<vmem>>, %arg7: memref<8x128xf32, #tpu.memory_space<vmem>>) attributes {dimension_semantics = [#tpu.dimension_semantics<arbitrary>], iteration_bounds = array<i64: 3>, scalar_prefetch = 0 : i64, scratch_operands = 2 : i64, tpu.core_type = #tpu.core_type<tc>, window_params = [{transform_indices = @transform_0, window_bounds = array<i64: 1, 24, 4>}, {pipeline_mode = #tpu.pipeline_mode<synchronous>, transform_indices = @transform_1, window_bounds = array<i64: 4, 128>}, {pipeline_mode = #tpu.pipeline_mode<synchronous>, transform_indices = @transform_2, window_bounds = array<i64: 128, 128>}, {pipeline_mode = #tpu.pipeline_mode<synchronous>, transform_indices = @transform_3, window_bounds = array<i64: 1, 128>}, {transform_indices = @transform_4, window_bounds = array<i64: 3, 8, 128>}]} {
    %c0_i32 = arith.constant 0 : i32
    %0 = arith.cmpi eq, %arg0, %c0_i32 : i32
    %1 = arith.extui %0 : i1 to i32
    %c0_i32_0 = arith.constant 0 : i32
    %2 = arith.cmpi ne, %1, %c0_i32_0 : i32
    scf.if %2 {
      %cst_33 = arith.constant 0.000000e+00 : f32
      %40 = vector.broadcast %cst_33 : f32 to vector<8x128xf32>
      %c0_34 = arith.constant 0 : index
      %c0_35 = arith.constant 0 : index
      %41 = vector.load %arg7[%c0_34, %c0_35] : memref<8x128xf32, #tpu.memory_space<vmem>>, vector<8x128xf32>
      tpu.vector_store %arg7[%c0_34, %c0_35], %40 {strides = array<i32>} : memref<8x128xf32, #tpu.memory_space<vmem>>, vector<8x128xf32>,
    } else {
    }
    %c0 = arith.constant 0 : index
    %c0_1 = arith.constant 0 : index
    %c0_2 = arith.constant 0 : index
    %3 = vector.load %arg1[%c0, %c0_1, %c0_2] : memref<1x24x4xbf16, #tpu.memory_space<vmem>>, vector<1x24x4xbf16>
    %4 = vector.shape_cast %3 : vector<1x24x4xbf16> to vector<24x4xbf16>
    %c0_3 = arith.constant 0 : index
    %c0_4 = arith.constant 0 : index
    %5 = vector.load %arg2[%c0_3, %c0_4] : memref<4x128xbf16, #tpu.memory_space<vmem>>, vector<4x128xbf16>
    %cst = arith.constant dense<0.000000e+00> : vector<24x128xf32>
    %6 = tpu.matmul %4, %5, %cst {dimension_numbers = #tpu.dot_dimension_numbers<[1], [0], [0], [1], [0, 0, 1, 1], [], []>} : vector<24x4xbf16>, vector<4x128xbf16>, vector<24x128xf32> -> vector<24x128xf32>
    %c0_5 = arith.constant 0 : index
    %c0_6 = arith.constant 0 : index
    %7 = vector.load %arg4[%c0_5, %c0_6] : memref<1x128xf32, #tpu.memory_space<vmem>>, vector<1x128xf32>
    %8 = vector.broadcast %7 : vector<1x128xf32> to vector<24x128xf32>
    %9 = arith.addf %6, %8 : vector<24x128xf32>
    %c0_7 = arith.constant 0 : index
    %c0_8 = arith.constant 0 : index
    %10 = vector.load %arg6[%c0_7, %c0_8] : memref<24x128xf32, #tpu.memory_space<vmem>>, vector<24x128xf32>
    tpu.vector_store %arg6[%c0_7, %c0_8], %9 {strides = array<i32>} : memref<24x128xf32, #tpu.memory_space<vmem>>, vector<24x128xf32>,
    %c0_9 = arith.constant 0 : index
    %c0_10 = arith.constant 0 : index
    %11 = vector.load %arg7[%c0_9, %c0_10] : memref<8x128xf32, #tpu.memory_space<vmem>>, vector<8x128xf32>
    %12 = arith.truncf %11 : vector<8x128xf32> to vector<8x128xbf16>
    %c0_11 = arith.constant 0 : index
    %c0_12 = arith.constant 0 : index
    %13 = vector.load %arg3[%c0_11, %c0_12] : memref<128x128xbf16, #tpu.memory_space<vmem>>, vector<128x128xbf16>
    %cst_13 = arith.constant dense<0.000000e+00> : vector<8x128xf32>
    %14 = tpu.matmul %12, %13, %cst_13 {dimension_numbers = #tpu.dot_dimension_numbers<[1], [0], [0], [1], [0, 0, 1, 1], [], []>} : vector<8x128xbf16>, vector<128x128xbf16>, vector<8x128xf32> -> vector<8x128xf32>
    %c0_14 = arith.constant 0 : index
    %c0_15 = arith.constant 0 : index
    %15 = vector.load %arg6[%c0_14, %c0_15] : memref<24x128xf32, #tpu.memory_space<vmem>>, vector<8x128xf32>
    %16 = arith.addf %15, %14 : vector<8x128xf32>
    %17 = math.tanh %16 : vector<8x128xf32>
    %c0_16 = arith.constant 0 : index
    %c0_17 = arith.constant 0 : index
    %c0_18 = arith.constant 0 : index
    %18 = vector.load %arg5[%c0_16, %c0_17, %c0_18] : memref<3x8x128xf32, #tpu.memory_space<vmem>>, vector<1x8x128xf32>
    %19 = vector.shape_cast %18 : vector<1x8x128xf32> to vector<8x128xf32>
    %20 = vector.shape_cast %17 : vector<8x128xf32> to vector<1x8x128xf32>
    tpu.vector_store %arg5[%c0_16, %c0_17, %c0_18], %20 {strides = array<i32>} : memref<3x8x128xf32, #tpu.memory_space<vmem>>, vector<1x8x128xf32>,
    %21 = arith.truncf %17 : vector<8x128xf32> to vector<8x128xbf16>
    %c0_19 = arith.constant 0 : index
    %c0_20 = arith.constant 0 : index
    %22 = vector.load %arg3[%c0_19, %c0_20] : memref<128x128xbf16, #tpu.memory_space<vmem>>, vector<128x128xbf16>
    %cst_21 = arith.constant dense<0.000000e+00> : vector<8x128xf32>
    %23 = tpu.matmul %21, %22, %cst_21 {dimension_numbers = #tpu.dot_dimension_numbers<[1], [0], [0], [1], [0, 0, 1, 1], [], []>} : vector<8x128xbf16>, vector<128x128xbf16>, vector<8x128xf32> -> vector<8x128xf32>
    %c8 = arith.constant 8 : index
    %c0_22 = arith.constant 0 : index
    %24 = vector.load %arg6[%c8, %c0_22] : memref<24x128xf32, #tpu.memory_space<vmem>>, vector<8x128xf32>
    %25 = arith.addf %24, %23 : vector<8x128xf32>
    %26 = math.tanh %25 : vector<8x128xf32>
    %c1 = arith.constant 1 : index
    %c0_23 = arith.constant 0 : index
    %c0_24 = arith.constant 0 : index
    %27 = vector.load %arg5[%c1, %c0_23, %c0_24] : memref<3x8x128xf32, #tpu.memory_space<vmem>>, vector<1x8x128xf32>
    %28 = vector.shape_cast %27 : vector<1x8x128xf32> to vector<8x128xf32>
    %29 = vector.shape_cast %26 : vector<8x128xf32> to vector<1x8x128xf32>
    tpu.vector_store %arg5[%c1, %c0_23, %c0_24], %29 {strides = array<i32>} : memref<3x8x128xf32, #tpu.memory_space<vmem>>, vector<1x8x128xf32>,
    %30 = arith.truncf %26 : vector<8x128xf32> to vector<8x128xbf16>
    %c0_25 = arith.constant 0 : index
    %c0_26 = arith.constant 0 : index
    %31 = vector.load %arg3[%c0_25, %c0_26] : memref<128x128xbf16, #tpu.memory_space<vmem>>, vector<128x128xbf16>
    %cst_27 = arith.constant dense<0.000000e+00> : vector<8x128xf32>
    %32 = tpu.matmul %30, %31, %cst_27 {dimension_numbers = #tpu.dot_dimension_numbers<[1], [0], [0], [1], [0, 0, 1, 1], [], []>} : vector<8x128xbf16>, vector<128x128xbf16>, vector<8x128xf32> -> vector<8x128xf32>
    %c16 = arith.constant 16 : index
    %c0_28 = arith.constant 0 : index
    %33 = vector.load %arg6[%c16, %c0_28] : memref<24x128xf32, #tpu.memory_space<vmem>>, vector<8x128xf32>
    %34 = arith.addf %33, %32 : vector<8x128xf32>
    %35 = math.tanh %34 : vector<8x128xf32>
    %c2 = arith.constant 2 : index
    %c0_29 = arith.constant 0 : index
    %c0_30 = arith.constant 0 : index
    %36 = vector.load %arg5[%c2, %c0_29, %c0_30] : memref<3x8x128xf32, #tpu.memory_space<vmem>>, vector<1x8x128xf32>
    %37 = vector.shape_cast %36 : vector<1x8x128xf32> to vector<8x128xf32>
    %38 = vector.shape_cast %35 : vector<8x128xf32> to vector<1x8x128xf32>
    tpu.vector_store %arg5[%c2, %c0_29, %c0_30], %38 {strides = array<i32>} : memref<3x8x128xf32, #tpu.memory_space<vmem>>, vector<1x8x128xf32>,
    %c0_31 = arith.constant 0 : index
    %c0_32 = arith.constant 0 : index
    %39 = vector.load %arg7[%c0_31, %c0_32] : memref<8x128xf32, #tpu.memory_space<vmem>>, vector<8x128xf32>
    tpu.vector_store %arg7[%c0_31, %c0_32], %35 {strides = array<i32>} : memref<8x128xf32, #tpu.memory_space<vmem>>, vector<8x128xf32>,
    return
  }
  func.func @transform_0(%arg0: i32) -> (i32, i32, i32) {
    %c0_i32 = arith.constant 0 : i32
    %c0_i32_0 = arith.constant 0 : i32
    %c0_i32_1 = arith.constant 0 : i32
    return %arg0, %c0_i32, %c0_i32_0 : i32, i32, i32
  }
  func.func @transform_1(%arg0: i32) -> (i32, i32) {
    %c0_i32 = arith.constant 0 : i32
    %c0_i32_0 = arith.constant 0 : i32
    %c0_i32_1 = arith.constant 0 : i32
    return %c0_i32, %c0_i32_0 : i32, i32
  }
  func.func @transform_2(%arg0: i32) -> (i32, i32) {
    %c0_i32 = arith.constant 0 : i32
    %c0_i32_0 = arith.constant 0 : i32
    %c0_i32_1 = arith.constant 0 : i32
    return %c0_i32, %c0_i32_0 : i32, i32
  }
  func.func @transform_3(%arg0: i32) -> (i32, i32) {
    %c0_i32 = arith.constant 0 : i32
    %c0_i32_0 = arith.constant 0 : i32
    %c0_i32_1 = arith.constant 0 : i32
    return %c0_i32, %c0_i32_0 : i32, i32
  }
  func.func @transform_4(%arg0: i32) -> (i32, i32, i32) {
    %c0_i32 = arith.constant 0 : i32
    %c0_i32_0 = arith.constant 0 : i32
    %c0_i32_1 = arith.constant 0 : i32
    return %arg0, %c0_i32, %c0_i32_0 : i32, i32, i32
  }
}

</mosaic_0001>

<llo_original>
// kernel: tpu_custom_call.1
$region0: #{tpu_custom_call.1}
  #allocation0 [shape = 'u32[]', space=smem, size = 0x4, offset = 0x4, fixed_abs, tag = 'smem constant byte address 0x4 - core index']
  #allocation1 [shape = 'u32[72,128]{1,0:T(1,128)}', space=vmem, size = 0x9000, scoped, tag = 'internal scratch']
  #allocation2 [shape = 'f32[24,128]{1,0:T(8,128)}', space=vmem, size = 0x3000, scoped, tag = 'scratch operand']
  #allocation3 [shape = 'f32[8,128]{1,0:T(8,128)}', space=vmem, size = 0x1000, scoped, tag = 'scratch operand']
  %s0 = inlined_call_operand.vmem [shape: bf16[3,24,4], index: 0, kind: input, shape index: {}]
  %s1 = inlined_call_operand.vmem [shape: bf16[4,128], index: 1, kind: input, shape index: {}]
  %s2 = inlined_call_operand.hbm [shape: bf16[128,128], index: 2, kind: input, shape index: {}]
  %s3 = inlined_call_operand.vmem [shape: f32[1,128], index: 3, kind: input, shape index: {}]
  %s4 = inlined_call_operand.hbm [shape: f32[9,8,128], index: 4, kind: output, shape index: {}]
  %s5 = sld [smem:[#allocation0]]
  $region57: #{tpu_custom_call.1} parent=0
    _
  %s7 = ssub.s32 1, %s5
  %s8 = scalar_select 0, %s7, %s5
  $region1: #{tpu_custom_call.1} parent=0
    #allocation4 [shape = 'u8[32768]{0}', space=vmem, size = 0x8000, scoped, tag = 'input window, operand 2, single buffered']
    #allocation5 [shape = 's32[2]{0}', space=sflag, size = 0x8, scoped, tag = 'scoped memory for tpu_custom_call.1']
    #allocation6 [shape = 's32[2]{0}', space=sflag, size = 0x8, scoped, tag = 'scoped memory for tpu_custom_call.1']
    #allocation7 [shape = 'u8[24576]{0}', space=vmem, size = 0x6000, scoped, tag = 'output window, operand 0']
    %9 = vsyncpa [#allocation5], 0
    %10 = vsyncpa [#allocation6], 0
    %s11 = scalar_lea.sflag [#allocation6], 1
    %12 = vsyncpa %s11, 0
    loop: start=0, step=1, limit=5
    $region2: #{tpu_custom_call.1} parent=1 // loop_pre_header
      _
    $region3: #{tpu_custom_call.1} parent=1 // loop_header
      %s14 = sphi 0, %s18
      %p15 = scmp.ge.s32.totalorder %s14, 5
      %s24 = sphi 0, %s26
      %s27 = sphi 0, %s24
      %s28 = sphi 0, %s27
      %s44 = sphi 0, %s28
      %s48 = sphi 0, %s48
      %s50 = sphi 0, %s48
      %s51 = sphi 0, %s50
      %s65 = sphi 0, %s51
      %s69 = sphi 0, %s69
      %s71 = sphi 0, %s69
      %s72 = sphi 0, %s71
      %s86 = sphi 0, %s72
      %s90 = sphi 0, %s90
      %s92 = sphi 0, %s90
      %s93 = sphi 0, %s92
      %s107 = sphi 0, %s93
      %s113 = sphi 0, %s115
      %s116 = sphi 0, %s113
      %s117 = sphi 0, %s116
      %s133 = sphi 0, %s117
    $region4: #{tpu_custom_call.1} parent=1 // loop_header_branch
      %17 = sbr.rel (%p15) target = $region8
    $region5: #{tpu_custom_call.1} parent=1 // loop_body
      %s19 = ssub.s32 %s14, 1
      %s20 = ssub.s32 %s14, 2
      %s21 = sadd.s32 %s14, 1
      %s22 = ssub.s32 %s14, %s21
      %p23 = scmp.eq.s32.totalorder %s22, 0
      %s25 = sadd.s32 %s24, 1
      %s26 = scalar_select %p23, %s24, %s25
      %p29 = pneg %p23
      %p30 = scmp.eq.s32.totalorder %s14, 2
      %p31 = por %p29, %p30
      %p32 = scmp.ne.s32.totalorder %s24, %s27
      %p33 = scmp.eq.s32.totalorder %s14, 0
      %p34 = por %p32, %p33
      %p35 = scmp.ne.s32.totalorder %s24, %s27
      %p36 = scmp.eq.s32.totalorder %s19, 2
      %p37 = por %p35, %p36
      %p38 = scmp.ne.s32.totalorder %s27, %s28
      %p39 = scmp.eq.s32.totalorder %s19, 0
      %p40 = por %p38, %p39
      %p41 = scmp.ne.s32.totalorder %s27, %s28
      %p42 = scmp.eq.s32.totalorder %s20, 2
      %p43 = por %p41, %p42
      %p45 = scmp.ne.s32.totalorder %s28, %s44
      %p46 = scmp.eq.s32.totalorder %s20, 0
      %p47 = por %p45, %p46
      %s49 = sadd.s32 %s48, 1
      %p52 = scmp.eq.s32.totalorder %s14, 2
      %p53 = scmp.ne.s32.totalorder %s48, %s50
      %p54 = scmp.eq.s32.totalorder %s14, 0
      %p55 = por %p53, %p54
      %p56 = scmp.ne.s32.totalorder %s48, %s50
      %p57 = scmp.eq.s32.totalorder %s19, 2
      %p58 = por %p56, %p57
      %p59 = scmp.ne.s32.totalorder %s50, %s51
      %p60 = scmp.eq.s32.totalorder %s19, 0
      %p61 = por %p59, %p60
      %p62 = scmp.ne.s32.totalorder %s50, %s51
      %p63 = scmp.eq.s32.totalorder %s20, 2
      %p64 = por %p62, %p63
      %p66 = scmp.ne.s32.totalorder %s51, %s65
      %p67 = scmp.eq.s32.totalorder %s20, 0
      %p68 = por %p66, %p67
      %s70 = sadd.s32 %s69, 1
      %p73 = scmp.eq.s32.totalorder %s14, 2
      %p74 = scmp.ne.s32.totalorder %s69, %s71
      %p75 = scmp.eq.s32.totalorder %s14, 0
      %p76 = por %p74, %p75
      %p77 = scmp.ne.s32.totalorder %s69, %s71
      %p78 = scmp.eq.s32.totalorder %s19, 2
      %p79 = por %p77, %p78
      %p80 = scmp.ne.s32.totalorder %s71, %s72
      %p81 = scmp.eq.s32.totalorder %s19, 0
      %p82 = por %p80, %p81
      %p83 = scmp.ne.s32.totalorder %s71, %s72
      %p84 = scmp.eq.s32.totalorder %s20, 2
      %p85 = por %p83, %p84
      %p87 = scmp.ne.s32.totalorder %s72, %s86
      %p88 = scmp.eq.s32.totalorder %s20, 0
      %p89 = por %p87, %p88
      %s91 = sadd.s32 %s90, 1
      %p94 = scmp.eq.s32.totalorder %s14, 2
      %p95 = scmp.ne.s32.totalorder %s90, %s92
      %p96 = scmp.eq.s32.totalorder %s14, 0
      %p97 = por %p95, %p96
      %p98 = scmp.ne.s32.totalorder %s90, %s92
      %p99 = scmp.eq.s32.totalorder %s19, 2
      %p100 = por %p98, %p99
      %p101 = scmp.ne.s32.totalorder %s92, %s93
      %p102 = scmp.eq.s32.totalorder %s19, 0
      %p103 = por %p101, %p102
      %p104 = scmp.ne.s32.totalorder %s92, %s93
      %p105 = scmp.eq.s32.totalorder %s20, 2
      %p106 = por %p104, %p105
      %p108 = scmp.ne.s32.totalorder %s93, %s107
      %p109 = scmp.eq.s32.totalorder %s20, 0
      %p110 = por %p108, %p109
      %s111 = ssub.s32 %s14, %s21
      %p112 = scmp.eq.s32.totalorder %s111, 0
      %s114 = sadd.s32 %s113, 1
      %s115 = scalar_select %p112, %s113, %s114
      %p118 = pneg %p112
      %p119 = scmp.eq.s32.totalorder %s14, 2
      %p120 = por %p118, %p119
      %p121 = scmp.ne.s32.totalorder %s113, %s116
      %p122 = scmp.eq.s32.totalorder %s14, 0
      %p123 = por %p121, %p122
      %p124 = scmp.ne.s32.totalorder %s113, %s116
      %p125 = scmp.eq.s32.totalorder %s19, 2
      %p126 = por %p124, %p125
      %p127 = scmp.ne.s32.totalorder %s116, %s117
      %p128 = scmp.eq.s32.totalorder %s19, 0
      %p129 = por %p127, %p128
      %p130 = scmp.ne.s32.totalorder %s116, %s117
      %p131 = scmp.eq.s32.totalorder %s20, 2
      %p132 = por %p130, %p131
      %p134 = scmp.ne.s32.totalorder %s117, %s133
      %p135 = scmp.eq.s32.totalorder %s20, 0
      %p136 = por %p134, %p135
      %p137 = scmp.le.s32.totalorder 1, %s14
      %p138 = scmp.lt.s32.totalorder %s14, 4
      %p139 = pnand %p137, %p138
      %p140 = pneg %p139
      // Predicated region
      $region9: #{tpu_custom_call.1} parent=5 // pred_check
        _
      $region10: #{tpu_custom_call.1} parent=5 // pred_check_branch
        %142 = sbr.rel (%p139) target = $region12
      $region11: #{tpu_custom_call.1} parent=5 // pred_region
        %s143 = ssub.s32 %s14, 1
        // Predicated region
        $region13: #{tpu_custom_call.1} parent=11 // pred_check
          %p144 = pneg %p61
        $region14: #{tpu_custom_call.1} parent=11 // pred_check_branch
          %146 = sbr.rel (%p144) target = $region16
        $region15: #{tpu_custom_call.1} parent=11 // pred_region
          _
        $region16: #{tpu_custom_call.1} parent=11 // pred_fallthru
          _
        // Predicated region
        $region17: #{tpu_custom_call.1} parent=11 // pred_check
          %p147 = pneg %p82
        $region18: #{tpu_custom_call.1} parent=11 // pred_check_branch
          %149 = sbr.rel (%p147) target = $region20
        $region19: #{tpu_custom_call.1} parent=11 // pred_region
          %151 = vsyncadd [#allocation5], 0
          %s152 = sshll.u32 %s2, 4
          %s153 = int_to_ptr.hbm [resolvable:$true] %s152
          %s154 = sshll.u32 [#allocation4], 4
          %s155 = int_to_ptr.vmem [resolvable:$true] %s154
          %160 = dma.hbm_to_vmem [thread:$0]  %s153, 1024, %s155, [#allocation5], 64, 64, 4
        $region20: #{tpu_custom_call.1} parent=11 // pred_fallthru
          _
        // Predicated region
        $region21: #{tpu_custom_call.1} parent=11 // pred_check
          %p161 = pneg %p103
        $region22: #{tpu_custom_call.1} parent=11 // pred_check_branch
          %163 = sbr.rel (%p161) target = $region24
        $region23: #{tpu_custom_call.1} parent=11 // pred_region
          _
        $region24: #{tpu_custom_call.1} parent=11 // pred_fallthru
          _
      $region12: #{tpu_custom_call.1} parent=5 // pred_fallthru
        _
      %p164 = scmp.lt.s32.totalorder %s14, 3
      // Predicated region
      $region25: #{tpu_custom_call.1} parent=5 // pred_check
        %p165 = pneg %p164
      $region26: #{tpu_custom_call.1} parent=5 // pred_check_branch
        %167 = sbr.rel (%p165) target = $region28
      $region27: #{tpu_custom_call.1} parent=5 // pred_region
        // Predicated region
        $region29: #{tpu_custom_call.1} parent=27 // pred_check
          %p168 = pneg %p34
        $region30: #{tpu_custom_call.1} parent=27 // pred_check_branch
          %170 = sbr.rel (%p168) target = $region32
        $region31: #{tpu_custom_call.1} parent=27 // pred_region
          %p171 = scmp.lt.s32.totalorder %s14, 2
          %s172 = scalar_select %p171, %s14, 2
          %s173 = smul.addr %s172, 3
          %s174 = smul.addr %s173, 4
          %s175 = scalar_lea.vmem %s0, %s174
        $region32: #{tpu_custom_call.1} parent=27 // pred_fallthru
          _
      $region28: #{tpu_custom_call.1} parent=5 // pred_fallthru
        _
      %p176 = scmp.le.s32.totalorder 1, %s14
      %p177 = scmp.lt.s32.totalorder %s14, 4
      %p178 = pnand %p176, %p177
      %p179 = pneg %p178
      // Predicated region
      $region33: #{tpu_custom_call.1} parent=5 // pred_check
        _
      $region34: #{tpu_custom_call.1} parent=5 // pred_check_branch
        %181 = sbr.rel (%p178) target = $region36
      $region35: #{tpu_custom_call.1} parent=5 // pred_region
        %s182 = ssub.s32 %s14, 1
        // Predicated region
        $region37: #{tpu_custom_call.1} parent=35 // pred_check
          %p183 = pneg %p82
        $region38: #{tpu_custom_call.1} parent=35 // pred_check_branch
          %185 = sbr.rel (%p183) target = $region40
        $region39: #{tpu_custom_call.1} parent=35 // pred_region
          %187 = dma.done [#allocation5], 1024
        $region40: #{tpu_custom_call.1} parent=35 // pred_fallthru
          _
        %p188 = scmp.lt.s32.totalorder %s19, 2
        %s189 = scalar_select %p188, %s19, 2
        %s190 = smul.addr %s189, 3
        %s191 = smul.addr %s190, 4
        %s192 = scalar_lea.vmem %s0, %s191
        %p193 = pneg %p40
        %p194 = pneg %p37
        %p195 = pneg %p61
        %p196 = pneg %p58
        %p197 = pneg %p82
        %p198 = pneg %p79
        %p199 = pneg %p103
        %p200 = pneg %p100
        %p201 = pneg %p129
        %p202 = pneg %p126
        %s203 = sand.u32 %s116, 1
        %s204 = scalar_lea.sflag [#allocation6], %s203
        %s205 = sand.u32 %s116, 1
        %s206 = smul.addr %s205, 24
        %s207 = scalar_lea.vmem [#allocation7], %s206
        %p208 = scmp.lt.s32.totalorder %s19, 2
        %s209 = scalar_select %p208, %s19, 2
        %s210 = smul.addr %s209, 3
        %s211 = smul.addr %s210, 4
        %s212 = scalar_lea.vmem %s0, %s211
        %s213 = smul.u32 3, %s19
        %p215 = scmp.eq.s32.totalorder %s19, 0
        // Predicated region
        $region41: #{tpu_custom_call.1} parent=35 // pred_check
          %p216 = pneg %p215
        $region42: #{tpu_custom_call.1} parent=35 // pred_check_branch
          %218 = sbr.rel (%p216) target = $region44
        $region43: #{tpu_custom_call.1} parent=35 // pred_region
          %219 = vst [vmem:[#allocation3] sm:$0xff] 0.0
        $region44: #{tpu_custom_call.1} parent=35 // pred_fallthru
          _
        %v220 = vld [vmem:[%s212] sm:$0xf]
        %v221 = vld [vmem:[%s212 + $0x4] sm:$0xf]
        %v222 = vld [vmem:[%s212 + $0x8] sm:$0xf]
        %v223 = vld [vmem:[%s1] sm:$0x3]
        %v224 = vld [vmem:[%s3] sm:$0x1]
        %v226 = vperm.slane %v224, 0
        %v231 = vunpack.c.l.b16 %v220
        %v232 = vunpack.c.l.b16 %v221
        %v233 = vunpack.c.l.b16 %v222
        %v234 = vpack.c.b16 %v232, %v231
        %v235 = vpack.c.b16 %v233, %v233
        %vm236 = vcmask 31744
        %v238 = vsel %vm236, %v234, 0
        %v241 = vsel %vm236, %v235, 0
        %vm243 = vcmask 1041408
        %v245 = vsel %vm243, %v223, 0
        %247 = vmatpush.bf16.msra.mxu0 0
        %248 = vmatpush.bf16.msra.mxu0 0
        %249 = vmatpush.bf16.msra.mxu0 0
        %250 = vmatpush.bf16.msra.mxu0 0
        %251 = vmatpush.bf16.msra.mxu0 0
        %252 = vmatpush.bf16.msra.mxu0 0
        %253 = vmatpush.bf16.msra.mxu0 0
        %254 = vmatpush.bf16.msra.mxu0 %v245
        %255 = vmatmul.bf16.gmra.mxu0 %v238
        %v256 = vpop.f32.mrf.mxu0
        %v257 = vadd.f32 %v226, %v256
        %v258 = vpop.f32.mrf.mxu0
        %v259 = vadd.f32 %v226, %v258
        %260 = vmatmul.bf16.gmra.mxu0 %v241
        %v261 = vpop.f32.mrf.mxu0
        %v262 = vadd.f32 %v226, %v261
        %v263 = vpop.f32.mrf.mxu0
        %264 = vdwg.mxu0
        %265 = vst [vmem:[#allocation2] sm:$0xff] %v257
        %266 = vst [vmem:[#allocation2 + $0x8] sm:$0xff] %v259
        %267 = vst [vmem:[#allocation2 + $0x10] sm:$0xff] %v262
        %v268 = vld [vmem:[#allocation3] sm:$0xff]
        %v269 = vpack.c.bf16 %v268, %v268
        %v270 = vld [vmem:[#allocation4] sm:$0xf]
        %v271 = vld [vmem:[#allocation4 + $0x4] sm:$0xf]
        %v272 = vld [vmem:[#allocation4 + $0x8] sm:$0xf]
        %v273 = vld [vmem:[#allocation4 + $0xc] sm:$0xf]
        %v274 = vld [vmem:[#allocation4 + $0x10] sm:$0xf]
        %v275 = vld [vmem:[#allocation4 + $0x14] sm:$0xf]
        %v276 = vld [vmem:[#allocation4 + $0x18] sm:$0xf]
        %v277 = vld [vmem:[#allocation4 + $0x1c] sm:$0xf]
        %v278 = vld [vmem:[#allocation4 + $0x20] sm:$0xf]
        %v279 = vld [vmem:[#allocation4 + $0x24] sm:$0xf]
        %v280 = vld [vmem:[#allocation4 + $0x28] sm:$0xf]
        %v281 = vld [vmem:[#allocation4 + $0x2c] sm:$0xf]
        %v282 = vld [vmem:[#allocation4 + $0x30] sm:$0xf]
        %v283 = vld [vmem:[#allocation4 + $0x34] sm:$0xf]
        %v284 = vld [vmem:[#allocation4 + $0x38] sm:$0xf]
        %v285 = vld [vmem:[#allocation4 + $0x3c] sm:$0xf]
        %v302 = vunpack.c.l.b16 %v270
        %v303 = vunpack.c.l.b16 %v271
        %v304 = vunpack.c.l.b16 %v272
        %v305 = vunpack.c.l.b16 %v273
        %v306 = vunpack.c.l.b16 %v274
        %v307 = vunpack.c.l.b16 %v275
        %v308 = vunpack.c.l.b16 %v276
        %v309 = vunpack.c.l.b16 %v277
        %v310 = vunpack.c.l.b16 %v278
        %v311 = vunpack.c.l.b16 %v279
        %v312 = vunpack.c.l.b16 %v280
        %v313 = vunpack.c.l.b16 %v281
        %v314 = vunpack.c.l.b16 %v282
        %v315 = vunpack.c.l.b16 %v283
        %v316 = vunpack.c.l.b16 %v284
        %v317 = vunpack.c.l.b16 %v285
        %v318 = vpack.c.b16 %v303, %v302
        %v319 = vpack.c.b16 %v305, %v304
        %v320 = vpack.c.b16 %v307, %v306
        %v321 = vpack.c.b16 %v309, %v308
        %v322 = vpack.c.b16 %v311, %v310
        %v323 = vpack.c.b16 %v313, %v312
        %v324 = vpack.c.b16 %v315, %v314
        %v325 = vpack.c.b16 %v317, %v316
        %334 = vmatpush.bf16.msra.mxu0 %v325
        %335 = vmatpush.bf16.msra.mxu0 %v324
        %336 = vmatpush.bf16.msra.mxu0 %v323
        %337 = vmatpush.bf16.msra.mxu0 %v322
        %338 = vmatpush.bf16.msra.mxu0 %v321
        %339 = vmatpush.bf16.msra.mxu0 %v320
        %340 = vmatpush.bf16.msra.mxu0 %v319
        %341 = vmatpush.bf16.msra.mxu0 %v318
        %342 = vmatmul.bf16.gmra.mxu0 %v269
        %v343 = vpop.f32.mrf.mxu0
        %v344 = vadd.f32 0.0, %v343
        %v345 = vpop.f32.mrf.mxu0
        %346 = vdwg.mxu0
        %v347 = vld [vmem:[#allocation2] sm:$0xff]
        %v348 = vadd.f32 %v347, %v344
        %v349 = vtanh.pop %v348
        %350 = vst [vmem:[%s207] sm:$0xff] %v349
        %v351 = vpack.c.bf16 %v349, %v349
        %v352 = vld [vmem:[#allocation4] sm:$0xf]
        %v353 = vld [vmem:[#allocation4 + $0x4] sm:$0xf]
        %v354 = vld [vmem:[#allocation4 + $0x8] sm:$0xf]
        %v355 = vld [vmem:[#allocation4 + $0xc] sm:$0xf]
        %v356 = vld [vmem:[#allocation4 + $0x10] sm:$0xf]
        %v357 = vld [vmem:[#allocation4 + $0x14] sm:$0xf]
        %v358 = vld [vmem:[#allocation4 + $0x18] sm:$0xf]
        %v359 = vld [vmem:[#allocation4 + $0x1c] sm:$0xf]
        %v360 = vld [vmem:[#allocation4 + $0x20] sm:$0xf]
        %v361 = vld [vmem:[#allocation4 + $0x24] sm:$0xf]
        %v362 = vld [vmem:[#allocation4 + $0x28] sm:$0xf]
        %v363 = vld [vmem:[#allocation4 + $0x2c] sm:$0xf]
        %v364 = vld [vmem:[#allocation4 + $0x30] sm:$0xf]
        %v365 = vld [vmem:[#allocation4 + $0x34] sm:$0xf]
        %v366 = vld [vmem:[#allocation4 + $0x38] sm:$0xf]
        %v367 = vld [vmem:[#allocation4 + $0x3c] sm:$0xf]
        %v384 = vunpack.c.l.b16 %v352
        %v385 = vunpack.c.l.b16 %v353
        %v386 = vunpack.c.l.b16 %v354
        %v387 = vunpack.c.l.b16 %v355
        %v388 = vunpack.c.l.b16 %v356
        %v389 = vunpack.c.l.b16 %v357
        %v390 = vunpack.c.l.b16 %v358
        %v391 = vunpack.c.l.b16 %v359
        %v392 = vunpack.c.l.b16 %v360
        %v393 = vunpack.c.l.b16 %v361
        %v394 = vunpack.c.l.b16 %v362
        %v395 = vunpack.c.l.b16 %v363
        %v396 = vunpack.c.l.b16 %v364
        %v397 = vunpack.c.l.b16 %v365
        %v398 = vunpack.c.l.b16 %v366
        %v399 = vunpack.c.l.b16 %v367
        %v400 = vpack.c.b16 %v385, %v384
        %v401 = vpack.c.b16 %v387, %v386
        %v402 = vpack.c.b16 %v389, %v388
        %v403 = vpack.c.b16 %v391, %v390
        %v404 = vpack.c.b16 %v393, %v392
        %v405 = vpack.c.b16 %v395, %v394
        %v406 = vpack.c.b16 %v397, %v396
        %v407 = vpack.c.b16 %v399, %v398
        %416 = vmatpush.bf16.msra.mxu0 %v407
        %417 = vmatpush.bf16.msra.mxu0 %v406
        %418 = vmatpush.bf16.msra.mxu0 %v405
        %419 = vmatpush.bf16.msra.mxu0 %v404
        %420 = vmatpush.bf16.msra.mxu0 %v403
        %421 = vmatpush.bf16.msra.mxu0 %v402
        %422 = vmatpush.bf16.msra.mxu0 %v401
        %423 = vmatpush.bf16.msra.mxu0 %v400
        %424 = vmatmul.bf16.gmra.mxu0 %v351
        %v425 = vpop.f32.mrf.mxu0
        %v426 = vadd.f32 0.0, %v425
        %v427 = vpop.f32.mrf.mxu0
        %428 = vdwg.mxu0
        %v429 = vld [vmem:[#allocation2 + $0x8] sm:$0xff]
        %v430 = vadd.f32 %v429, %v426
        %v431 = vtanh.pop %v430
        %s432 = scalar_lea.vmem %s207, 8 [#allocation7]
        %433 = vst [vmem:[%s432] sm:$0xff] %v431
        %v434 = vpack.c.bf16 %v431, %v431
        %v435 = vld [vmem:[#allocation4] sm:$0xf]
        %v436 = vld [vmem:[#allocation4 + $0x4] sm:$0xf]
        %v437 = vld [vmem:[#allocation4 + $0x8] sm:$0xf]
        %v438 = vld [vmem:[#allocation4 + $0xc] sm:$0xf]
        %v439 = vld [vmem:[#allocation4 + $0x10] sm:$0xf]
        %v440 = vld [vmem:[#allocation4 + $0x14] sm:$0xf]
        %v441 = vld [vmem:[#allocation4 + $0x18] sm:$0xf]
        %v442 = vld [vmem:[#allocation4 + $0x1c] sm:$0xf]
        %v443 = vld [vmem:[#allocation4 + $0x20] sm:$0xf]
        %v444 = vld [vmem:[#allocation4 + $0x24] sm:$0xf]
        %v445 = vld [vmem:[#allocation4 + $0x28] sm:$0xf]
        %v446 = vld [vmem:[#allocation4 + $0x2c] sm:$0xf]
        %v447 = vld [vmem:[#allocation4 + $0x30] sm:$0xf]
        %v448 = vld [vmem:[#allocation4 + $0x34] sm:$0xf]
        %v449 = vld [vmem:[#allocation4 + $0x38] sm:$0xf]
        %v450 = vld [vmem:[#allocation4 + $0x3c] sm:$0xf]
        %v467 = vunpack.c.l.b16 %v435
        %v468 = vunpack.c.l.b16 %v436
        %v469 = vunpack.c.l.b16 %v437
        %v470 = vunpack.c.l.b16 %v438
        %v471 = vunpack.c.l.b16 %v439
        %v472 = vunpack.c.l.b16 %v440
        %v473 = vunpack.c.l.b16 %v441
        %v474 = vunpack.c.l.b16 %v442
        %v475 = vunpack.c.l.b16 %v443
        %v476 = vunpack.c.l.b16 %v444
        %v477 = vunpack.c.l.b16 %v445
        %v478 = vunpack.c.l.b16 %v446
        %v479 = vunpack.c.l.b16 %v447
        %v480 = vunpack.c.l.b16 %v448
        %v481 = vunpack.c.l.b16 %v449
        %v482 = vunpack.c.l.b16 %v450
        %v483 = vpack.c.b16 %v468, %v467
        %v484 = vpack.c.b16 %v470, %v469
        %v485 = vpack.c.b16 %v472, %v471
        %v486 = vpack.c.b16 %v474, %v473
        %v487 = vpack.c.b16 %v476, %v475
        %v488 = vpack.c.b16 %v478, %v477
        %v489 = vpack.c.b16 %v480, %v479
        %v490 = vpack.c.b16 %v482, %v481
        %499 = vmatpush.bf16.msra.mxu0 %v490
        %500 = vmatpush.bf16.msra.mxu0 %v489
        %501 = vmatpush.bf16.msra.mxu0 %v488
        %502 = vmatpush.bf16.msra.mxu0 %v487
        %503 = vmatpush.bf16.msra.mxu0 %v486
        %504 = vmatpush.bf16.msra.mxu0 %v485
        %505 = vmatpush.bf16.msra.mxu0 %v484
        %506 = vmatpush.bf16.msra.mxu0 %v483
        %507 = vmatmul.bf16.gmra.mxu0 %v434
        %v508 = vpop.f32.mrf.mxu0
        %v509 = vadd.f32 0.0, %v508
        %v510 = vpop.f32.mrf.mxu0
        %511 = vdwg.mxu0
        %v512 = vld [vmem:[#allocation2 + $0x10] sm:$0xff]
        %v513 = vadd.f32 %v512, %v509
        %v514 = vtanh.pop %v513
        %s515 = scalar_lea.vmem %s207, 16 [#allocation7]
        %516 = vst [vmem:[%s515] sm:$0xff] %v514
        %517 = vst [vmem:[#allocation3] sm:$0xff] %v514
        %s518 = sand.u32 %s116, 1
        %s519 = scalar_lea.sflag [#allocation6], %s518
        %s520 = sand.u32 %s116, 1
        %s521 = smul.addr %s520, 24
        %s522 = scalar_lea.vmem [#allocation7], %s521
        // Predicated region
        $region45: #{tpu_custom_call.1} parent=35 // pred_check
          %p523 = pneg %p126
        $region46: #{tpu_custom_call.1} parent=35 // pred_check_branch
          %525 = sbr.rel (%p523) target = $region48
        $region47: #{tpu_custom_call.1} parent=35 // pred_region
          %s526 = smul.u32 3, %s19
          %528 = vsyncadd %s519, 0
          %s529 = smul.addr %s526, 8
          %s530 = scalar_lea.hbm %s4, %s529
          %s531 = sshll.u32 %s522, 4
          %s532 = int_to_ptr.vmem [resolvable:$true] %s531
          %s533 = sshll.u32 %s530, 4
          %s534 = int_to_ptr.hbm [resolvable:$true] %s533
          %539 = dma.vmem_to_hbm [thread:$0]  %s532, 384, %s534, %s519, 128, 128, 8
        $region48: #{tpu_custom_call.1} parent=35 // pred_fallthru
          _
      $region36: #{tpu_custom_call.1} parent=5 // pred_fallthru
        _
      %p540 = scmp.le.s32.totalorder 2, %s14
      // Predicated region
      $region49: #{tpu_custom_call.1} parent=5 // pred_check
        %p541 = pneg %p540
      $region50: #{tpu_custom_call.1} parent=5 // pred_check_branch
        %543 = sbr.rel (%p541) target = $region52
      $region51: #{tpu_custom_call.1} parent=5 // pred_region
        %s544 = ssub.s32 %s14, 2
        // Predicated region
        $region53: #{tpu_custom_call.1} parent=51 // pred_check
          %p545 = pneg %p132
        $region54: #{tpu_custom_call.1} parent=51 // pred_check_branch
          %547 = sbr.rel (%p545) target = $region56
        $region55: #{tpu_custom_call.1} parent=51 // pred_region
          %s548 = sand.u32 %s117, 1
          %s549 = scalar_lea.sflag [#allocation6], %s548
          %s550 = sand.u32 %s117, 1
          %s551 = smul.addr %s550, 24
          %s552 = scalar_lea.vmem [#allocation7], %s551
          %554 = dma.done %s549, 384
        $region56: #{tpu_custom_call.1} parent=51 // pred_fallthru
          _
      $region52: #{tpu_custom_call.1} parent=5 // pred_fallthru
        _
    $region6: #{tpu_custom_call.1} parent=1 // loop_footer
      %s18 = sadd.s32 1, %s14
    $region7: #{tpu_custom_call.1} parent=1 // loop_footer_branch
      %13 = sbr.rel target = $region3
    $region8: #{tpu_custom_call.1} parent=1 // loop_exit
      _
    %555 = vsyncpa [#allocation5], 1
    %s556 = scalar_lea.sflag [#allocation5], 1
    %557 = vsyncpa %s556, 1
    %558 = vsyncpa [#allocation6], 1
    %s559 = scalar_lea.sflag [#allocation6], 1
    %560 = vsyncpa %s559, 1

</llo_original>
